<compile_context>
chip_gen: v5e
topology: v5e:2x2
jax: 0.10.0
libtpu: 0.0.40
codegen_flags: <defaults>
</compile_context>

<pallas_src>
import functools

import jax
import jax.numpy as jnp
from jax.experimental import pallas as pl
from jax.experimental.pallas import tpu as pltpu


_VMEM_LIMIT_BYTES = 48 * 1024 * 1024      # below v7x's 64 MiB physical VMEM
_FUSED_TABLE_BUDGET = 4 * 1024 * 1024     # max bytes for the VMEM-resident x table
_FUSED_TOTAL_BUDGET = 24 * 1024 * 1024    # conservative per-step VMEM budget


def _round_up(x, m):
    return (x + m - 1) // m * m


def _pick_tile(n, tile_n):
    tile = min(tile_n, _round_up(n, 16))
    tile = _round_up(tile, 16)            # bf16 blocks want >= (16, 128) tiles
    # Keep >= 2 node tiles when possible so both v7x TensorCores get work.
    if _round_up(n, tile) // tile < 2 and tile >= 32:
        tile = _round_up((tile + 1) // 2, 16)
    return tile


# ----------------------------------------------------------------------------
# Shared epilogue: store bf16 conv tile + numerically robust BN partial stats.
# ----------------------------------------------------------------------------
def _bn_stats_epilogue(acc, o_ref, s_ref, m2_ref, *, tile, n_real):
    # Rows past the real node count are exact zeros (they gather the all-zero
    # feature row), so the plain column sum is exact; only the mean-centered
    # M2 needs the row mask.
    o_ref[...] = acc.astype(o_ref.dtype)
    i = pl.program_id(0)
    cnt = jnp.minimum(tile, n_real - i * tile)              # real rows in this tile
    s = jnp.sum(acc, axis=0, keepdims=True)                 # (1, CP)
    mu = s / cnt.astype(jnp.float32)
    row = jax.lax.broadcasted_iota(jnp.int32, (tile, 1), 0)
    d = jnp.where(row < cnt, acc - mu, 0.0)
    m2 = jnp.sum(d * d, axis=0, keepdims=True)              # (1, CP)
    s_ref[...] = s[None]
    m2_ref[...] = m2[None]


# ----------------------------------------------------------------------------
# Kernel A (fused): in-kernel neighbor gather + conv matmul + BN partials
# ----------------------------------------------------------------------------
def _conv_fused_kernel(x_ref, idx_ref, w_ref, o_ref, s_ref, m2_ref, *, tile, n_real):
    # x_ref:   (NROWS, C_in) f32   node features + trailing all-zero rows (VMEM resident)
    # idx_ref: (tile, K)     int32 neighbor ids; missing / padded entries -> zero row
    # w_ref:   (K, C_in, CP) bf16
    c_in = x_ref.shape[1]
    k = idx_ref.shape[1]
    cp = w_ref.shape[2]
    x = x_ref[...]
    idx = idx_ref[...]
    acc = jnp.zeros((tile, cp), jnp.float32)
    for kk in range(k):                                       # static unroll (K=27)
        ik = jnp.broadcast_to(idx[:, kk:kk + 1], (tile, c_in))
        xk = jnp.take_along_axis(x, ik, axis=0, mode="promise_in_bounds")
        acc = acc + jnp.dot(xk.astype(jnp.bfloat16), w_ref[kk],
                            preferred_element_type=jnp.float32)
    _bn_stats_epilogue(acc, o_ref, s_ref, m2_ref, tile=tile, n_real=n_real)


def _conv_fused_call(x_rows, idx, w3, *, tile, n_real):
    nrows, c_in = x_rows.shape
    npad, k = idx.shape
    cp = w3.shape[2]
    num_tiles = npad // tile
    kernel = functools.partial(_conv_fused_kernel, tile=tile, n_real=n_real)
    return pl.pallas_call(
        kernel,
        out_shape=(
            jax.ShapeDtypeStruct((npad, cp), jnp.bfloat16),
            jax.ShapeDtypeStruct((num_tiles, 1, cp), jnp.float32),
            jax.ShapeDtypeStruct((num_tiles, 1, cp), jnp.float32),
        ),
        grid_spec=pltpu.PrefetchScalarGridSpec(
            num_scalar_prefetch=0,
            grid=(num_tiles,),
            in_specs=[
                pl.BlockSpec((nrows, c_in), lambda i: (0, 0)),     # feature table
                pl.BlockSpec((tile, k), lambda i: (i, 0)),         # neighbor ids
                pl.BlockSpec((k, c_in, cp), lambda i: (0, 0, 0)),  # weights
            ],
            out_specs=(
                pl.BlockSpec((tile, cp), lambda i: (i, 0)),
                pl.BlockSpec((1, 1, cp), lambda i: (i, 0, 0)),
                pl.BlockSpec((1, 1, cp), lambda i: (i, 0, 0)),
            ),
        ),
        compiler_params=pltpu.CompilerParams(
            dimension_semantics=("parallel",),
            vmem_limit_bytes=_VMEM_LIMIT_BYTES,
        ),
    )(x_rows, idx, w3)


# ----------------------------------------------------------------------------
# Kernel A (fallback): pre-packed patch matmul + BN partials (XLA gather)
# ----------------------------------------------------------------------------
def _conv_prepacked_kernel(p_ref, w_ref, o_ref, s_ref, m2_ref, *, tile, n_real):
    acc = jnp.dot(p_ref[...], w_ref[...], preferred_element_type=jnp.float32)
    _bn_stats_epilogue(acc, o_ref, s_ref, m2_ref, tile=tile, n_real=n_real)


def _conv_prepacked_call(patches, w2d, *, tile, n_real):
    npad, kcp = patches.shape
    cp = w2d.shape[1]
    num_tiles = npad // tile
    kernel = functools.partial(_conv_prepacked_kernel, tile=tile, n_real=n_real)
    return pl.pallas_call(
        kernel,
        out_shape=(
            jax.ShapeDtypeStruct((npad, cp), jnp.bfloat16),
            jax.ShapeDtypeStruct((num_tiles, 1, cp), jnp.float32),
            jax.ShapeDtypeStruct((num_tiles, 1, cp), jnp.float32),
        ),
        grid_spec=pltpu.PrefetchScalarGridSpec(
            num_scalar_prefetch=0,
            grid=(num_tiles,),
            in_specs=[
                pl.BlockSpec((tile, kcp), lambda i: (i, 0)),
                pl.BlockSpec((kcp, cp), lambda i: (0, 0)),
            ],
            out_specs=(
                pl.BlockSpec((tile, cp), lambda i: (i, 0)),
                pl.BlockSpec((1, 1, cp), lambda i: (i, 0, 0)),
                pl.BlockSpec((1, 1, cp), lambda i: (i, 0, 0)),
            ),
        ),
        compiler_params=pltpu.CompilerParams(
            dimension_semantics=("parallel",),
            vmem_limit_bytes=_VMEM_LIMIT_BYTES,
        ),
    )(patches, w2d)


# ----------------------------------------------------------------------------
# Kernel B: fused BatchNorm affine + ReLU (reads bf16 conv, writes f32)
# ----------------------------------------------------------------------------
def _bn_relu_kernel(x_ref, scale_ref, shift_ref, o_ref):
    y = x_ref[...].astype(jnp.float32) * scale_ref[...] + shift_ref[...]
    o_ref[...] = jnp.maximum(y, 0.0)


def _bn_relu_call(conv, scale, shift, *, tile):
    npad, cp = conv.shape
    return pl.pallas_call(
        _bn_relu_kernel,
        out_shape=jax.ShapeDtypeStruct((npad, cp), jnp.float32),
        grid_spec=pltpu.PrefetchScalarGridSpec(
            num_scalar_prefetch=0,
            grid=(npad // tile,),
            in_specs=[
                pl.BlockSpec((tile, cp), lambda i: (i, 0)),
                pl.BlockSpec((1, cp), lambda i: (0, 0)),
                pl.BlockSpec((1, cp), lambda i: (0, 0)),
            ],
            out_specs=pl.BlockSpec((tile, cp), lambda i: (i, 0)),
        ),
        compiler_params=pltpu.CompilerParams(dimension_semantics=("parallel",)),
    )(conv, scale, shift)


# ----------------------------------------------------------------------------
# Full forward: OctreeConv -> BatchNorm2d (training-mode stats) -> ReLU
# ----------------------------------------------------------------------------
def _forward(x, neigh, weight, gamma, beta, *, tile_n, bn_eps, fuse_gather):
    n, c_in = x.shape
    k = neigh.shape[1]
    c_out = weight.shape[2]
    cp = _round_up(c_out, 128)          # lane-dense output channels
    tile = _pick_tile(n, tile_n)
    npad = _round_up(n, tile)
    num_tiles = npad // tile

    # Missing neighbors (-1) and padded rows point at the all-zero feature row n.
    idx = jnp.where(neigh < 0, n, neigh).astype(jnp.int32)
    idx = jnp.pad(idx, ((0, npad - n), (0, 0)), constant_values=n)

    if fuse_gather:
        # Fused path: the node-feature table stays VMEM-resident and the gather
        # runs inside the conv kernel; no K*C_in patch matrix in HBM.
        nrows = _round_up(n + 1, 8)
        x_rows = jnp.zeros((nrows, c_in), jnp.float32).at[:n].set(x.astype(jnp.float32))
        w3 = jnp.pad(weight.astype(jnp.bfloat16), ((0, 0), (0, 0), (0, cp - c_out)))
        conv, psum, pm2 = _conv_fused_call(x_rows, idx, w3, tile=tile, n_real=n)
    else:
        # Fallback: XLA materializes the bf16 patch matrix, one big MXU matmul.
        x_bf = x.astype(jnp.bfloat16)
        x_rows = jnp.concatenate([x_bf, jnp.zeros((1, c_in), jnp.bfloat16)], axis=0)
        kc = k * c_in
        kcp = _round_up(kc, 128)
        patches = x_rows[idx].reshape(npad, kc)
        patches = jnp.pad(patches, ((0, 0), (0, kcp - kc)))
        w2d = weight.reshape(kc, c_out).astype(jnp.bfloat16)
        w2d = jnp.pad(w2d, ((0, kcp - kc), (0, cp - c_out)))
        conv, psum, pm2 = _conv_prepacked_call(patches, w2d, tile=tile, n_real=n)

    # Combine per-tile (count, sum, M2) partials -> biased mean/var (robust, f32).
    counts = jnp.minimum(tile, n - jnp.arange(num_tiles) * tile).astype(jnp.float32)
    counts = counts.reshape(num_tiles, 1)
    s = psum[:, 0, :]
    m2 = pm2[:, 0, :]
    mean = jnp.sum(s, axis=0, keepdims=True) / n
    mu_t = s / counts
    var = jnp.sum(m2 + counts * jnp.square(mu_t - mean), axis=0, keepdims=True) / n
    var = jnp.maximum(var, 0.0)
    inv_std = jax.lax.rsqrt(var + bn_eps)

    gamma_p = jnp.pad(gamma.astype(jnp.float32), (0, cp - c_out)).reshape(1, cp)
    beta_p = jnp.pad(beta.astype(jnp.float32), (0, cp - c_out)).reshape(1, cp)
    scale = gamma_p * inv_std
    shift = beta_p - mean * scale

    y = _bn_relu_call(conv, scale, shift, tile=tile)

    # TODO(synk): BatchNorm running_mean/running_var update (momentum=0.01) is
    # training-state bookkeeping and does not affect this forward output.
    return y[:n, :c_out]


# ----------------------------------------------------------------------------
# Pure-JAX reference (module semantics). matmul_dtype / conv_store_dtype mirror
# the kernel's bf16 MXU precision and bf16-stored conv intermediate.
# ----------------------------------------------------------------------------
def reference(x, neigh, weight, gamma, beta, bn_eps=1e-5,
              matmul_dtype=jnp.float32, conv_store_dtype=jnp.float32):
    n, c_in = x.shape
    k = neigh.shape[1]
    c_out = weight.shape[2]
    x_rows = jnp.concatenate([x, jnp.zeros((1, c_in), x.dtype)], axis=0)
    idx = jnp.where(neigh < 0, n, neigh)
    patches = x_rows[idx].reshape(n, k * c_in)
    conv = jnp.dot(patches.astype(matmul_dtype),
                   weight.reshape(k * c_in, c_out).astype(matmul_dtype),
                   preferred_element_type=jnp.float32)
    mean = conv.mean(axis=0, keepdims=True)
    var = ((conv - mean) ** 2).mean(axis=0, keepdims=True)
    inv_std = jax.lax.rsqrt(var + bn_eps)
    scale = gamma.reshape(1, -1) * inv_std
    shift = beta.reshape(1, -1) - mean * scale
    conv_q = conv.astype(conv_store_dtype).astype(jnp.float32)
    return jnp.maximum(conv_q * scale + shift, 0.0)


# ----------------------------------------------------------------------------
# Plan selection: prefer the fused-gather kernel; fall back to the XLA-gather
# path if it is out of VMEM budget, fails to lower/compile, or fails a quick
# numeric sanity check.
# ----------------------------------------------------------------------------
_PLAN_CACHE = {}


def _fused_fits_vmem(n, c_in, k, c_out, tile):
    cp = _round_up(c_out, 128)
    nrows = _round_up(n + 1, 8)
    x_bytes = nrows * c_in * 4
    total = (2 * x_bytes                      # feature table (count double-buffered)
             + 2 * tile * k * 4               # neighbor-id tile
             + 2 * k * c_in * cp * 2          # weights
             + 2 * tile * cp * 2              # bf16 conv tile
             + tile * cp * 4                  # f32 accumulator
             + 4 * cp * 4)                    # stats tiles
    return x_bytes <= _FUSED_TABLE_BUDGET and total <= _FUSED_TOTAL_BUDGET


def _select_plan(x, neigh, weight, gamma, beta, *, tile_n, bn_eps):
    n, c_in = x.shape
    k = neigh.shape[1]
    c_out = weight.shape[2]
    tile = _pick_tile(n, tile_n)
    fused = jax.jit(functools.partial(_forward, tile_n=tile_n, bn_eps=bn_eps,
                                      fuse_gather=True))
    fallback = jax.jit(functools.partial(_forward, tile_n=tile_n, bn_eps=bn_eps,
                                         fuse_gather=False))
    if _fused_fits_vmem(n, c_in, k, c_out, tile):
        try:
            fused.lower(x, neigh, weight, gamma, beta).compile()
            out = jax.block_until_ready(fused(x, neigh, weight, gamma, beta))
            ref = reference(x, neigh, weight, gamma, beta, bn_eps=bn_eps,
                            matmul_dtype=jnp.bfloat16,
                            conv_store_dtype=jnp.bfloat16)
            if bool(jnp.allclose(out, ref, atol=5e-2, rtol=5e-2)):
                return fused
        except Exception:
            # In-kernel gather did not lower/compile on this backend/config.
            pass
    return fallback


def octree_conv_bn_relu(x, neigh, weight, gamma, beta, *, tile_n=512, bn_eps=1e-5):
    """OctreeConv -> BatchNorm2d (training-mode stats) -> ReLU."""
    key = (x.shape, str(x.dtype), neigh.shape, weight.shape, tile_n, float(bn_eps))
    fn = _PLAN_CACHE.get(key)
    if fn is None:
        fn = _select_plan(x, neigh, weight, gamma, beta, tile_n=tile_n, bn_eps=bn_eps)
        _PLAN_CACHE[key] = fn
    return fn(x, neigh, weight, gamma, beta)


if __name__ == "__main__":
    # Small synthetic octree problem:
    #   depth node count N = 64, C_in = 4, C_out = 32, kernel_size=[3] -> K = 27.
    N_NODES, C_IN, C_OUT, K = 64, 4, 32, 27

    key = jax.random.PRNGKey(0)
    k_x, k_n, k_w = jax.random.split(key, 3)

    x = jax.random.normal(k_x, (N_NODES, C_IN), dtype=jnp.float32)
    # Synthetic octree neighbor table; -1 marks a missing neighbor.
    neigh = jax.random.randint(k_n, (N_NODES, K), -1, N_NODES, dtype=jnp.int32)

    # OctreeConv weight [K, C_in, C_out]; BatchNorm gamma=1, beta=0 (default init).
    weight = 0.1 * jax.random.normal(k_w, (K, C_IN, C_OUT), dtype=jnp.float32)
    gamma = jnp.ones((C_OUT,), jnp.float32)
    beta = jnp.zeros((C_OUT,), jnp.float32)

    out = octree_conv_bn_relu(x, neigh, weight, gamma, beta)
    out = jax.block_until_ready(out)
    assert out.shape == (N_NODES, C_OUT)
    assert out.dtype == jnp.float32

    # Strict check against a reference using the same bf16 matmul precision and
    # the same bf16-stored conv intermediate.
    ref_matched = reference(x, neigh, weight, gamma, beta,
                            matmul_dtype=jnp.bfloat16, conv_store_dtype=jnp.bfloat16)
    # Loose sanity check against the full-f32 module math.
    ref_f32 = reference(x, neigh, weight, gamma, beta)

    err_m = float(jnp.max(jnp.abs(out - ref_matched)))
    err_f = float(jnp.max(jnp.abs(out - ref_f32)))
    assert jnp.allclose(out, ref_matched, atol=3e-3, rtol=3e-3), err_m
    assert jnp.allclose(out, ref_f32, atol=5e-2, rtol=5e-2), err_f

    print("KERNEL_OK")
</pallas_src>

<mosaic_0001>
module attributes {stable_mosaic.version = 11 : i64} {
  func.func @_conv_prepacked_kernel(%arg0: i32, %arg1: memref<32x128xbf16, #tpu.memory_space<vmem>>, %arg2: memref<128x128xbf16, #tpu.memory_space<vmem>>, %arg3: memref<32x128xbf16, #tpu.memory_space<vmem>>, %arg4: memref<1x1x128xf32, #tpu.memory_space<vmem>>, %arg5: memref<1x1x128xf32, #tpu.memory_space<vmem>>) attributes {dimension_semantics = [#tpu.dimension_semantics<parallel>], iteration_bounds = array<i64: 2>, scalar_prefetch = 0 : i64, scratch_operands = 0 : i64, tpu.core_type = #tpu.core_type<tc>, window_params = [{transform_indices = @transform_0, window_bounds = array<i64: 32, 128>}, {pipeline_mode = #tpu.pipeline_mode<synchronous>, transform_indices = @transform_1, window_bounds = array<i64: 128, 128>}, {transform_indices = @transform_2, window_bounds = array<i64: 32, 128>}, {transform_indices = @transform_3, window_bounds = array<i64: 1, 1, 128>}, {transform_indices = @transform_4, window_bounds = array<i64: 1, 1, 128>}]} {
    %c0 = arith.constant 0 : index
    %c0_0 = arith.constant 0 : index
    %0 = vector.load %arg1[%c0, %c0_0] : memref<32x128xbf16, #tpu.memory_space<vmem>>, vector<32x128xbf16>
    %c0_1 = arith.constant 0 : index
    %c0_2 = arith.constant 0 : index
    %1 = vector.load %arg2[%c0_1, %c0_2] : memref<128x128xbf16, #tpu.memory_space<vmem>>, vector<128x128xbf16>
    %cst = arith.constant dense<0.000000e+00> : vector<32x128xf32>
    %2 = tpu.matmul %0, %1, %cst {dimension_numbers = #tpu.dot_dimension_numbers<[1], [0], [0], [1], [0, 0, 1, 1], [], []>} : vector<32x128xbf16>, vector<128x128xbf16>, vector<32x128xf32> -> vector<32x128xf32>
    %3 = arith.truncf %2 : vector<32x128xf32> to vector<32x128xbf16>
    %c0_3 = arith.constant 0 : index
    %c0_4 = arith.constant 0 : index
    %4 = vector.load %arg3[%c0_3, %c0_4] : memref<32x128xbf16, #tpu.memory_space<vmem>>, vector<32x128xbf16>
    tpu.vector_store %arg3[%c0_3, %c0_4], %3 {strides = array<i32>} : memref<32x128xbf16, #tpu.memory_space<vmem>>, vector<32x128xbf16>,
    %c32_i32 = arith.constant 32 : i32
    %5 = arith.muli %arg0, %c32_i32 : i32
    %c64_i32 = arith.constant 64 : i32
    %6 = arith.subi %c64_i32, %5 : i32
    %c32_i32_5 = arith.constant 32 : i32
    %7 = arith.minsi %c32_i32_5, %6 : i32
    %cst_6 = arith.constant dense<0.000000e+00> : vector<128xf32>
    %8 = vector.multi_reduction <add>, %2, %cst_6 [0] : vector<32x128xf32> to vector<128xf32>
    %9 = vector.shape_cast %8 : vector<128xf32> to vector<1x128xf32>
    %10 = arith.sitofp %7 : i32 to f32
    %11 = vector.broadcast %10 : f32 to vector<1x128xf32>
    %12 = arith.divf %9, %11 : vector<1x128xf32>
    %13 = tpu.iota {dimensions = array<i32: 0>} : vector<32x1xi32>
    %14 = vector.broadcast %7 : i32 to vector<32x1xi32>
    %15 = arith.cmpi slt, %13, %14 : vector<32x1xi32>
    %16 = vector.broadcast %12 : vector<1x128xf32> to vector<32x128xf32>
    %17 = arith.subf %2, %16 : vector<32x128xf32>
    %cst_7 = arith.constant 0.000000e+00 : f32
    %18 = vector.shape_cast %15 : vector<32x1xi1> to vector<32x1xi1>
    %19 = vector.broadcast %18 : vector<32x1xi1> to vector<32x128xi1>
    %20 = vector.broadcast %cst_7 : f32 to vector<32x128xf32>
    %21 = arith.select %19, %17, %20 : vector<32x128xi1>, vector<32x128xf32>
    %22 = arith.mulf %21, %21 : vector<32x128xf32>
    %cst_8 = arith.constant dense<0.000000e+00> : vector<128xf32>
    %23 = vector.multi_reduction <add>, %22, %cst_8 [0] : vector<32x128xf32> to vector<128xf32>
    %24 = vector.shape_cast %23 : vector<128xf32> to vector<1x128xf32>
    %25 = vector.shape_cast %9 : vector<1x128xf32> to vector<1x1x128xf32>
    %c0_9 = arith.constant 0 : index
    %c0_10 = arith.constant 0 : index
    %c0_11 = arith.constant 0 : index
    %26 = vector.load %arg4[%c0_9, %c0_10, %c0_11] : memref<1x1x128xf32, #tpu.memory_space<vmem>>, vector<1x1x128xf32>
    tpu.vector_store %arg4[%c0_9, %c0_10, %c0_11], %25 {strides = array<i32>} : memref<1x1x128xf32, #tpu.memory_space<vmem>>, vector<1x1x128xf32>,
    %27 = vector.shape_cast %24 : vector<1x128xf32> to vector<1x1x128xf32>
    %c0_12 = arith.constant 0 : index
    %c0_13 = arith.constant 0 : index
    %c0_14 = arith.constant 0 : index
    %28 = vector.load %arg5[%c0_12, %c0_13, %c0_14] : memref<1x1x128xf32, #tpu.memory_space<vmem>>, vector<1x1x128xf32>
    tpu.vector_store %arg5[%c0_12, %c0_13, %c0_14], %27 {strides = array<i32>} : memref<1x1x128xf32, #tpu.memory_space<vmem>>, vector<1x1x128xf32>,
    return
  }
  func.func @transform_0(%arg0: i32) -> (i32, i32) {
    %c0_i32 = arith.constant 0 : i32
    %c0_i32_0 = arith.constant 0 : i32
    return %arg0, %c0_i32 : i32, i32
  }
  func.func @transform_1(%arg0: i32) -> (i32, i32) {
    %c0_i32 = arith.constant 0 : i32
    %c0_i32_0 = arith.constant 0 : i32
    %c0_i32_1 = arith.constant 0 : i32
    return %c0_i32, %c0_i32_0 : i32, i32
  }
  func.func @transform_2(%arg0: i32) -> (i32, i32) {
    %c0_i32 = arith.constant 0 : i32
    %c0_i32_0 = arith.constant 0 : i32
    return %arg0, %c0_i32 : i32, i32
  }
  func.func @transform_3(%arg0: i32) -> (i32, i32, i32) {
    %c0_i32 = arith.constant 0 : i32
    %c0_i32_0 = arith.constant 0 : i32
    %c0_i32_1 = arith.constant 0 : i32
    return %arg0, %c0_i32, %c0_i32_0 : i32, i32, i32
  }
  func.func @transform_4(%arg0: i32) -> (i32, i32, i32) {
    %c0_i32 = arith.constant 0 : i32
    %c0_i32_0 = arith.constant 0 : i32
    %c0_i32_1 = arith.constant 0 : i32
    return %arg0, %c0_i32, %c0_i32_0 : i32, i32, i32
  }
}

module attributes {stable_mosaic.version = 11 : i64} {
  func.func @_bn_relu_kernel(%arg0: i32, %arg1: memref<32x128xbf16, #tpu.memory_space<vmem>>, %arg2: memref<1x128xf32, #tpu.memory_space<vmem>>, %arg3: memref<1x128xf32, #tpu.memory_space<vmem>>, %arg4: memref<32x128xf32, #tpu.memory_space<vmem>>) attributes {dimension_semantics = [#tpu.dimension_semantics<parallel>], iteration_bounds = array<i64: 2>, scalar_prefetch = 0 : i64, scratch_operands = 0 : i64, tpu.core_type = #tpu.core_type<tc>, window_params = [{transform_indices = @transform_0, window_bounds = array<i64: 32, 128>}, {pipeline_mode = #tpu.pipeline_mode<synchronous>, transform_indices = @transform_1, window_bounds = array<i64: 1, 128>}, {pipeline_mode = #tpu.pipeline_mode<synchronous>, transform_indices = @transform_2, window_bounds = array<i64: 1, 128>}, {transform_indices = @transform_3, window_bounds = array<i64: 32, 128>}]} {
    %c0 = arith.constant 0 : index
    %c0_0 = arith.constant 0 : index
    %0 = vector.load %arg1[%c0, %c0_0] : memref<32x128xbf16, #tpu.memory_space<vmem>>, vector<32x128xbf16>
    %1 = arith.extf %0 : vector<32x128xbf16> to vector<32x128xf32>
    %c0_1 = arith.constant 0 : index
    %c0_2 = arith.constant 0 : index
    %2 = vector.load %arg2[%c0_1, %c0_2] : memref<1x128xf32, #tpu.memory_space<vmem>>, vector<1x128xf32>
    %3 = vector.broadcast %2 : vector<1x128xf32> to vector<32x128xf32>
    %4 = arith.mulf %1, %3 : vector<32x128xf32>
    %c0_3 = arith.constant 0 : index
    %c0_4 = arith.constant 0 : index
    %5 = vector.load %arg3[%c0_3, %c0_4] : memref<1x128xf32, #tpu.memory_space<vmem>>, vector<1x128xf32>
    %6 = vector.broadcast %5 : vector<1x128xf32> to vector<32x128xf32>
    %7 = arith.addf %4, %6 : vector<32x128xf32>
    %cst = arith.constant 0.000000e+00 : f32
    %8 = vector.broadcast %cst : f32 to vector<32x128xf32>
    %9 = arith.maximumf %7, %8 : vector<32x128xf32>
    %c0_5 = arith.constant 0 : index
    %c0_6 = arith.constant 0 : index
    %10 = vector.load %arg4[%c0_5, %c0_6] : memref<32x128xf32, #tpu.memory_space<vmem>>, vector<32x128xf32>
    tpu.vector_store %arg4[%c0_5, %c0_6], %9 {strides = array<i32>} : memref<32x128xf32, #tpu.memory_space<vmem>>, vector<32x128xf32>,
    return
  }
  func.func @transform_0(%arg0: i32) -> (i32, i32) {
    %c0_i32 = arith.constant 0 : i32
    %c0_i32_0 = arith.constant 0 : i32
    return %arg0, %c0_i32 : i32, i32
  }
  func.func @transform_1(%arg0: i32) -> (i32, i32) {
    %c0_i32 = arith.constant 0 : i32
    %c0_i32_0 = arith.constant 0 : i32
    %c0_i32_1 = arith.constant 0 : i32
    return %c0_i32, %c0_i32_0 : i32, i32
  }
  func.func @transform_2(%arg0: i32) -> (i32, i32) {
    %c0_i32 = arith.constant 0 : i32
    %c0_i32_0 = arith.constant 0 : i32
    %c0_i32_1 = arith.constant 0 : i32
    return %c0_i32, %c0_i32_0 : i32, i32
  }
  func.func @transform_3(%arg0: i32) -> (i32, i32) {
    %c0_i32 = arith.constant 0 : i32
    %c0_i32_0 = arith.constant 0 : i32
    return %arg0, %c0_i32 : i32, i32
  }
}

</mosaic_0001>

<llo_original>
// kernel: _forward.3
$region0: #{_forward.3}
  #allocation0 [shape = 'u32[]', space=smem, size = 0x4, offset = 0x4, fixed_abs, tag = 'smem constant byte address 0x4 - core index']
  #allocation1 [shape = 'u32[72,128]{1,0:T(1,128)}', space=vmem, size = 0x9000, scoped, tag = 'internal scratch']
  %s0 = inlined_call_operand.vmem [shape: bf16[64,128], index: 0, kind: input, shape index: {}]
  %s1 = inlined_call_operand.vmem [shape: f32[1,128], index: 1, kind: input, shape index: {}]
  %s2 = inlined_call_operand.vmem [shape: f32[1,128], index: 2, kind: input, shape index: {}]
  %s3 = inlined_call_operand.vmem [shape: f32[64,128], index: 3, kind: output, shape index: {}]
  %s4 = sld [smem:[#allocation0]]
  $region45: #{_forward.3} parent=0
    _
  %s6 = ssub.s32 1, %s4
  %s7 = scalar_select 0, %s6, %s4
  loop: start=0, step=1, limit=4
  $region2: #{_forward.3} parent=0 // loop_pre_header
    _
  $region3: #{_forward.3} parent=0 // loop_header
    %s9 = sphi 0, %s13
    %p10 = scmp.ge.s32.totalorder %s9, 4
    %s19 = sphi 0, %s21
    %s22 = sphi 0, %s19
    %s23 = sphi 0, %s22
    %s39 = sphi 0, %s23
    %s43 = sphi 0, %s43
    %s45 = sphi 0, %s43
    %s46 = sphi 0, %s45
    %s60 = sphi 0, %s46
    %s64 = sphi 0, %s64
    %s66 = sphi 0, %s64
    %s67 = sphi 0, %s66
    %s81 = sphi 0, %s67
    %s87 = sphi 0, %s89
    %s90 = sphi 0, %s87
    %s91 = sphi 0, %s90
    %s107 = sphi 0, %s91
  $region4: #{_forward.3} parent=0 // loop_header_branch
    %12 = sbr.rel (%p10) target = $region8
  $region5: #{_forward.3} parent=0 // loop_body
    %s14 = ssub.s32 %s9, 1
    %s15 = ssub.s32 %s9, 2
    %s16 = sadd.s32 %s9, 1
    %s17 = ssub.s32 %s9, %s16
    %p18 = scmp.eq.s32.totalorder %s17, 0
    %s20 = sadd.s32 %s19, 1
    %s21 = scalar_select %p18, %s19, %s20
    %p24 = pneg %p18
    %p25 = scmp.eq.s32.totalorder %s9, 1
    %p26 = por %p24, %p25
    %p27 = scmp.ne.s32.totalorder %s19, %s22
    %p28 = scmp.eq.s32.totalorder %s9, 0
    %p29 = por %p27, %p28
    %p30 = scmp.ne.s32.totalorder %s19, %s22
    %p31 = scmp.eq.s32.totalorder %s14, 1
    %p32 = por %p30, %p31
    %p33 = scmp.ne.s32.totalorder %s22, %s23
    %p34 = scmp.eq.s32.totalorder %s14, 0
    %p35 = por %p33, %p34
    %p36 = scmp.ne.s32.totalorder %s22, %s23
    %p37 = scmp.eq.s32.totalorder %s15, 1
    %p38 = por %p36, %p37
    %p40 = scmp.ne.s32.totalorder %s23, %s39
    %p41 = scmp.eq.s32.totalorder %s15, 0
    %p42 = por %p40, %p41
    %s44 = sadd.s32 %s43, 1
    %p47 = scmp.eq.s32.totalorder %s9, 1
    %p48 = scmp.ne.s32.totalorder %s43, %s45
    %p49 = scmp.eq.s32.totalorder %s9, 0
    %p50 = por %p48, %p49
    %p51 = scmp.ne.s32.totalorder %s43, %s45
    %p52 = scmp.eq.s32.totalorder %s14, 1
    %p53 = por %p51, %p52
    %p54 = scmp.ne.s32.totalorder %s45, %s46
    %p55 = scmp.eq.s32.totalorder %s14, 0
    %p56 = por %p54, %p55
    %p57 = scmp.ne.s32.totalorder %s45, %s46
    %p58 = scmp.eq.s32.totalorder %s15, 1
    %p59 = por %p57, %p58
    %p61 = scmp.ne.s32.totalorder %s46, %s60
    %p62 = scmp.eq.s32.totalorder %s15, 0
    %p63 = por %p61, %p62
    %s65 = sadd.s32 %s64, 1
    %p68 = scmp.eq.s32.totalorder %s9, 1
    %p69 = scmp.ne.s32.totalorder %s64, %s66
    %p70 = scmp.eq.s32.totalorder %s9, 0
    %p71 = por %p69, %p70
    %p72 = scmp.ne.s32.totalorder %s64, %s66
    %p73 = scmp.eq.s32.totalorder %s14, 1
    %p74 = por %p72, %p73
    %p75 = scmp.ne.s32.totalorder %s66, %s67
    %p76 = scmp.eq.s32.totalorder %s14, 0
    %p77 = por %p75, %p76
    %p78 = scmp.ne.s32.totalorder %s66, %s67
    %p79 = scmp.eq.s32.totalorder %s15, 1
    %p80 = por %p78, %p79
    %p82 = scmp.ne.s32.totalorder %s67, %s81
    %p83 = scmp.eq.s32.totalorder %s15, 0
    %p84 = por %p82, %p83
    %s85 = ssub.s32 %s9, %s16
    %p86 = scmp.eq.s32.totalorder %s85, 0
    %s88 = sadd.s32 %s87, 1
    %s89 = scalar_select %p86, %s87, %s88
    %p92 = pneg %p86
    %p93 = scmp.eq.s32.totalorder %s9, 1
    %p94 = por %p92, %p93
    %p95 = scmp.ne.s32.totalorder %s87, %s90
    %p96 = scmp.eq.s32.totalorder %s9, 0
    %p97 = por %p95, %p96
    %p98 = scmp.ne.s32.totalorder %s87, %s90
    %p99 = scmp.eq.s32.totalorder %s14, 1
    %p100 = por %p98, %p99
    %p101 = scmp.ne.s32.totalorder %s90, %s91
    %p102 = scmp.eq.s32.totalorder %s14, 0
    %p103 = por %p101, %p102
    %p104 = scmp.ne.s32.totalorder %s90, %s91
    %p105 = scmp.eq.s32.totalorder %s15, 1
    %p106 = por %p104, %p105
    %p108 = scmp.ne.s32.totalorder %s91, %s107
    %p109 = scmp.eq.s32.totalorder %s15, 0
    %p110 = por %p108, %p109
    %p111 = scmp.le.s32.totalorder 1, %s9
    %p112 = scmp.lt.s32.totalorder %s9, 3
    %p113 = pnand %p111, %p112
    %p114 = pneg %p113
    // Predicated region
    $region9: #{_forward.3} parent=5 // pred_check
      _
    $region10: #{_forward.3} parent=5 // pred_check_branch
      %116 = sbr.rel (%p113) target = $region12
    $region11: #{_forward.3} parent=5 // pred_region
      %s117 = ssub.s32 %s9, 1
      // Predicated region
      $region13: #{_forward.3} parent=11 // pred_check
        %p118 = pneg %p56
      $region14: #{_forward.3} parent=11 // pred_check_branch
        %120 = sbr.rel (%p118) target = $region16
      $region15: #{_forward.3} parent=11 // pred_region
        _
      $region16: #{_forward.3} parent=11 // pred_fallthru
        _
      // Predicated region
      $region17: #{_forward.3} parent=11 // pred_check
        %p121 = pneg %p77
      $region18: #{_forward.3} parent=11 // pred_check_branch
        %123 = sbr.rel (%p121) target = $region20
      $region19: #{_forward.3} parent=11 // pred_region
        _
      $region20: #{_forward.3} parent=11 // pred_fallthru
        _
    $region12: #{_forward.3} parent=5 // pred_fallthru
      _
    %p124 = scmp.lt.s32.totalorder %s9, 2
    // Predicated region
    $region21: #{_forward.3} parent=5 // pred_check
      %p125 = pneg %p124
    $region22: #{_forward.3} parent=5 // pred_check_branch
      %127 = sbr.rel (%p125) target = $region24
    $region23: #{_forward.3} parent=5 // pred_region
      // Predicated region
      $region25: #{_forward.3} parent=23 // pred_check
        %p128 = pneg %p29
      $region26: #{_forward.3} parent=23 // pred_check_branch
        %130 = sbr.rel (%p128) target = $region28
      $region27: #{_forward.3} parent=23 // pred_region
        %s131 = smul.u32 4, %s9
        %p132 = scmp.lt.s32.totalorder %s131, 7
        %s133 = scalar_select %p132, %s131, 7
        %s134 = smul.addr %s133, 4
        %s135 = scalar_lea.vmem %s0, %s134
        %s136 = smul.u32 4, %s9
      $region28: #{_forward.3} parent=23 // pred_fallthru
        _
    $region24: #{_forward.3} parent=5 // pred_fallthru
      _
    %p137 = scmp.le.s32.totalorder 1, %s9
    %p138 = scmp.lt.s32.totalorder %s9, 3
    %p139 = pnand %p137, %p138
    %p140 = pneg %p139
    // Predicated region
    $region29: #{_forward.3} parent=5 // pred_check
      _
    $region30: #{_forward.3} parent=5 // pred_check_branch
      %142 = sbr.rel (%p139) target = $region32
    $region31: #{_forward.3} parent=5 // pred_region
      %s143 = ssub.s32 %s9, 1
      %s144 = smul.u32 4, %s14
      %p145 = scmp.lt.s32.totalorder %s144, 7
      %s146 = scalar_select %p145, %s144, 7
      %s147 = smul.addr %s146, 4
      %s148 = scalar_lea.vmem %s0, %s147
      %p149 = pneg %p35
      %p150 = pneg %p32
      %p151 = pneg %p56
      %p152 = pneg %p53
      %p153 = pneg %p77
      %p154 = pneg %p74
      %p155 = pneg %p103
      %p156 = pneg %p100
      %s157 = smul.u32 4, %s14
      %p158 = scmp.lt.s32.totalorder %s157, 7
      %s159 = scalar_select %p158, %s157, 7
      %s160 = smul.addr %s159, 8
      %s161 = scalar_lea.vmem %s3, %s160
      %s162 = smul.u32 4, %s14
      %p163 = scmp.lt.s32.totalorder %s162, 7
      %s164 = scalar_select %p163, %s162, 7
      %s165 = smul.addr %s164, 4
      %s166 = scalar_lea.vmem %s0, %s165
      %s167 = smul.u32 4, %s14
      %s168 = smul.u32 4, %s14
      %p169 = scmp.lt.s32.totalorder %s168, 7
      %s170 = scalar_select %p169, %s168, 7
      %s171 = smul.addr %s170, 8
      %s172 = scalar_lea.vmem %s3, %s171
      %s173 = smul.u32 4, %s14
      %v174 = vld [vmem:[%s166] sm:$0xf]
      %v175 = vld [vmem:[%s166 + $0x4] sm:$0xf]
      %v176 = vld [vmem:[%s166 + $0x8] sm:$0xf]
      %v177 = vld [vmem:[%s166 + $0xc] sm:$0xf]
      %v178 = vunpack.c.l.bf16 %v174
      %v179 = vunpack.c.l.bf16 %v175
      %v180 = vunpack.c.l.bf16 %v176
      %v181 = vunpack.c.l.bf16 %v177
      %v182 = vld [vmem:[%s1] sm:$0x1]
      %v184 = vperm.slane %v182, 0
      %v186 = vmul.f32 %v178, %v184
      %v187 = vmul.f32 %v179, %v184
      %v188 = vmul.f32 %v180, %v184
      %v189 = vmul.f32 %v181, %v184
      %v190 = vld [vmem:[%s2] sm:$0x1]
      %v192 = vperm.slane %v190, 0
      %v194 = vadd.f32 %v186, %v192
      %v195 = vadd.f32 %v187, %v192
      %v196 = vadd.f32 %v188, %v192
      %v197 = vadd.f32 %v189, %v192
      %v198 = vmax.f32 %v194, 0.0
      %v199 = vmax.f32 %v195, 0.0
      %v200 = vmax.f32 %v196, 0.0
      %v201 = vmax.f32 %v197, 0.0
      %202 = vst [vmem:[%s172] sm:$0xff] %v198
      %203 = vst [vmem:[%s172 + $0x8] sm:$0xff] %v199
      %204 = vst [vmem:[%s172 + $0x10] sm:$0xff] %v200
      %205 = vst [vmem:[%s172 + $0x18] sm:$0xff] %v201
      %s206 = smul.u32 4, %s14
      %p207 = scmp.lt.s32.totalorder %s206, 7
      %s208 = scalar_select %p207, %s206, 7
      %s209 = smul.addr %s208, 8
      %s210 = scalar_lea.vmem %s3, %s209
      // Predicated region
      $region33: #{_forward.3} parent=31 // pred_check
        %p211 = pneg %p100
      $region34: #{_forward.3} parent=31 // pred_check_branch
        %213 = sbr.rel (%p211) target = $region36
      $region35: #{_forward.3} parent=31 // pred_region
        %s214 = smul.u32 4, %s14
      $region36: #{_forward.3} parent=31 // pred_fallthru
        _
    $region32: #{_forward.3} parent=5 // pred_fallthru
      _
    %p215 = scmp.le.s32.totalorder 2, %s9
    // Predicated region
    $region37: #{_forward.3} parent=5 // pred_check
      %p216 = pneg %p215
    $region38: #{_forward.3} parent=5 // pred_check_branch
      %218 = sbr.rel (%p216) target = $region40
    $region39: #{_forward.3} parent=5 // pred_region
      %s219 = ssub.s32 %s9, 2
      // Predicated region
      $region41: #{_forward.3} parent=39 // pred_check
        %p220 = pneg %p106
      $region42: #{_forward.3} parent=39 // pred_check_branch
        %222 = sbr.rel (%p220) target = $region44
      $region43: #{_forward.3} parent=39 // pred_region
        %s223 = smul.u32 4, %s15
        %p224 = scmp.lt.s32.totalorder %s223, 7
        %s225 = scalar_select %p224, %s223, 7
        %s226 = smul.addr %s225, 8
        %s227 = scalar_lea.vmem %s3, %s226
      $region44: #{_forward.3} parent=39 // pred_fallthru
        _
    $region40: #{_forward.3} parent=5 // pred_fallthru
      _
  $region6: #{_forward.3} parent=0 // loop_footer
    %s13 = sadd.s32 1, %s9
  $region7: #{_forward.3} parent=0 // loop_footer_branch
    %8 = sbr.rel target = $region3
  $region8: #{_forward.3} parent=0 // loop_exit
    _

// kernel: _forward.2
$region0: #{_forward.2}
  #allocation0 [shape = 'u32[]', space=smem, size = 0x4, offset = 0x4, fixed_abs, tag = 'smem constant byte address 0x4 - core index']
  #allocation1 [shape = 'u32[72,128]{1,0:T(1,128)}', space=vmem, size = 0x9000, scoped, tag = 'internal scratch']
  %s0 = inlined_call_operand.vmem [shape: bf16[64,128], index: 0, kind: input, shape index: {}]
  %s1 = inlined_call_operand.vmem [shape: bf16[128,128], index: 1, kind: input, shape index: {}]
  %s2 = inlined_call_operand.vmem [shape: bf16[64,128], index: 2, kind: output, shape index: {0}]
  %s3 = inlined_call_operand.vmem [shape: f32[2,1,128], index: 3, kind: output, shape index: {1}]
  %s4 = inlined_call_operand.vmem [shape: f32[2,1,128], index: 4, kind: output, shape index: {2}]
  %5 = xla_tuple %s2, %s3, %s4
  %s6 = sld [smem:[#allocation0]]
  $region57: #{_forward.2} parent=0
    _
  %s8 = ssub.s32 1, %s6
  %s9 = scalar_select 0, %s8, %s6
  loop: start=0, step=1, limit=4
  $region2: #{_forward.2} parent=0 // loop_pre_header
    _
  $region3: #{_forward.2} parent=0 // loop_header
    %s11 = sphi 0, %s15
    %p12 = scmp.ge.s32.totalorder %s11, 4
    %s21 = sphi 0, %s23
    %s24 = sphi 0, %s21
    %s25 = sphi 0, %s24
    %s41 = sphi 0, %s25
    %s45 = sphi 0, %s45
    %s47 = sphi 0, %s45
    %s48 = sphi 0, %s47
    %s62 = sphi 0, %s48
    %s68 = sphi 0, %s70
    %s71 = sphi 0, %s68
    %s72 = sphi 0, %s71
    %s88 = sphi 0, %s72
    %s94 = sphi 0, %s96
    %s97 = sphi 0, %s94
    %s98 = sphi 0, %s97
    %s114 = sphi 0, %s98
    %s120 = sphi 0, %s122
    %s123 = sphi 0, %s120
    %s124 = sphi 0, %s123
    %s140 = sphi 0, %s124
  $region4: #{_forward.2} parent=0 // loop_header_branch
    %14 = sbr.rel (%p12) target = $region8
  $region5: #{_forward.2} parent=0 // loop_body
    %s16 = ssub.s32 %s11, 1
    %s17 = ssub.s32 %s11, 2
    %s18 = sadd.s32 %s11, 1
    %s19 = ssub.s32 %s11, %s18
    %p20 = scmp.eq.s32.totalorder %s19, 0
    %s22 = sadd.s32 %s21, 1
    %s23 = scalar_select %p20, %s21, %s22
    %p26 = pneg %p20
    %p27 = scmp.eq.s32.totalorder %s11, 1
    %p28 = por %p26, %p27
    %p29 = scmp.ne.s32.totalorder %s21, %s24
    %p30 = scmp.eq.s32.totalorder %s11, 0
    %p31 = por %p29, %p30
    %p32 = scmp.ne.s32.totalorder %s21, %s24
    %p33 = scmp.eq.s32.totalorder %s16, 1
    %p34 = por %p32, %p33
    %p35 = scmp.ne.s32.totalorder %s24, %s25
    %p36 = scmp.eq.s32.totalorder %s16, 0
    %p37 = por %p35, %p36
    %p38 = scmp.ne.s32.totalorder %s24, %s25
    %p39 = scmp.eq.s32.totalorder %s17, 1
    %p40 = por %p38, %p39
    %p42 = scmp.ne.s32.totalorder %s25, %s41
    %p43 = scmp.eq.s32.totalorder %s17, 0
    %p44 = por %p42, %p43
    %s46 = sadd.s32 %s45, 1
    %p49 = scmp.eq.s32.totalorder %s11, 1
    %p50 = scmp.ne.s32.totalorder %s45, %s47
    %p51 = scmp.eq.s32.totalorder %s11, 0
    %p52 = por %p50, %p51
    %p53 = scmp.ne.s32.totalorder %s45, %s47
    %p54 = scmp.eq.s32.totalorder %s16, 1
    %p55 = por %p53, %p54
    %p56 = scmp.ne.s32.totalorder %s47, %s48
    %p57 = scmp.eq.s32.totalorder %s16, 0
    %p58 = por %p56, %p57
    %p59 = scmp.ne.s32.totalorder %s47, %s48
    %p60 = scmp.eq.s32.totalorder %s17, 1
    %p61 = por %p59, %p60
    %p63 = scmp.ne.s32.totalorder %s48, %s62
    %p64 = scmp.eq.s32.totalorder %s17, 0
    %p65 = por %p63, %p64
    %s66 = ssub.s32 %s11, %s18
    %p67 = scmp.eq.s32.totalorder %s66, 0
    %s69 = sadd.s32 %s68, 1
    %s70 = scalar_select %p67, %s68, %s69
    %p73 = pneg %p67
    %p74 = scmp.eq.s32.totalorder %s11, 1
    %p75 = por %p73, %p74
    %p76 = scmp.ne.s32.totalorder %s68, %s71
    %p77 = scmp.eq.s32.totalorder %s11, 0
    %p78 = por %p76, %p77
    %p79 = scmp.ne.s32.totalorder %s68, %s71
    %p80 = scmp.eq.s32.totalorder %s16, 1
    %p81 = por %p79, %p80
    %p82 = scmp.ne.s32.totalorder %s71, %s72
    %p83 = scmp.eq.s32.totalorder %s16, 0
    %p84 = por %p82, %p83
    %p85 = scmp.ne.s32.totalorder %s71, %s72
    %p86 = scmp.eq.s32.totalorder %s17, 1
    %p87 = por %p85, %p86
    %p89 = scmp.ne.s32.totalorder %s72, %s88
    %p90 = scmp.eq.s32.totalorder %s17, 0
    %p91 = por %p89, %p90
    %s92 = ssub.s32 %s11, %s18
    %p93 = scmp.eq.s32.totalorder %s92, 0
    %s95 = sadd.s32 %s94, 1
    %s96 = scalar_select %p93, %s94, %s95
    %p99 = pneg %p93
    %p100 = scmp.eq.s32.totalorder %s11, 1
    %p101 = por %p99, %p100
    %p102 = scmp.ne.s32.totalorder %s94, %s97
    %p103 = scmp.eq.s32.totalorder %s11, 0
    %p104 = por %p102, %p103
    %p105 = scmp.ne.s32.totalorder %s94, %s97
    %p106 = scmp.eq.s32.totalorder %s16, 1
    %p107 = por %p105, %p106
    %p108 = scmp.ne.s32.totalorder %s97, %s98
    %p109 = scmp.eq.s32.totalorder %s16, 0
    %p110 = por %p108, %p109
    %p111 = scmp.ne.s32.totalorder %s97, %s98
    %p112 = scmp.eq.s32.totalorder %s17, 1
    %p113 = por %p111, %p112
    %p115 = scmp.ne.s32.totalorder %s98, %s114
    %p116 = scmp.eq.s32.totalorder %s17, 0
    %p117 = por %p115, %p116
    %s118 = ssub.s32 %s11, %s18
    %p119 = scmp.eq.s32.totalorder %s118, 0
    %s121 = sadd.s32 %s120, 1
    %s122 = scalar_select %p119, %s120, %s121
    %p125 = pneg %p119
    %p126 = scmp.eq.s32.totalorder %s11, 1
    %p127 = por %p125, %p126
    %p128 = scmp.ne.s32.totalorder %s120, %s123
    %p129 = scmp.eq.s32.totalorder %s11, 0
    %p130 = por %p128, %p129
    %p131 = scmp.ne.s32.totalorder %s120, %s123
    %p132 = scmp.eq.s32.totalorder %s16, 1
    %p133 = por %p131, %p132
    %p134 = scmp.ne.s32.totalorder %s123, %s124
    %p135 = scmp.eq.s32.totalorder %s16, 0
    %p136 = por %p134, %p135
    %p137 = scmp.ne.s32.totalorder %s123, %s124
    %p138 = scmp.eq.s32.totalorder %s17, 1
    %p139 = por %p137, %p138
    %p141 = scmp.ne.s32.totalorder %s124, %s140
    %p142 = scmp.eq.s32.totalorder %s17, 0
    %p143 = por %p141, %p142
    %p144 = scmp.le.s32.totalorder 1, %s11
    %p145 = scmp.lt.s32.totalorder %s11, 3
    %p146 = pnand %p144, %p145
    %p147 = pneg %p146
    // Predicated region
    $region9: #{_forward.2} parent=5 // pred_check
      _
    $region10: #{_forward.2} parent=5 // pred_check_branch
      %149 = sbr.rel (%p146) target = $region12
    $region11: #{_forward.2} parent=5 // pred_region
      %s150 = ssub.s32 %s11, 1
      // Predicated region
      $region13: #{_forward.2} parent=11 // pred_check
        %p151 = pneg %p58
      $region14: #{_forward.2} parent=11 // pred_check_branch
        %153 = sbr.rel (%p151) target = $region16
      $region15: #{_forward.2} parent=11 // pred_region
        _
      $region16: #{_forward.2} parent=11 // pred_fallthru
        _
    $region12: #{_forward.2} parent=5 // pred_fallthru
      _
    %p154 = scmp.lt.s32.totalorder %s11, 2
    // Predicated region
    $region17: #{_forward.2} parent=5 // pred_check
      %p155 = pneg %p154
    $region18: #{_forward.2} parent=5 // pred_check_branch
      %157 = sbr.rel (%p155) target = $region20
    $region19: #{_forward.2} parent=5 // pred_region
      // Predicated region
      $region21: #{_forward.2} parent=19 // pred_check
        %p158 = pneg %p31
      $region22: #{_forward.2} parent=19 // pred_check_branch
        %160 = sbr.rel (%p158) target = $region24
      $region23: #{_forward.2} parent=19 // pred_region
        %s161 = smul.u32 4, %s11
        %p162 = scmp.lt.s32.totalorder %s161, 7
        %s163 = scalar_select %p162, %s161, 7
        %s164 = smul.addr %s163, 4
        %s165 = scalar_lea.vmem %s0, %s164
        %s166 = smul.u32 4, %s11
      $region24: #{_forward.2} parent=19 // pred_fallthru
        _
    $region20: #{_forward.2} parent=5 // pred_fallthru
      _
    %p167 = scmp.le.s32.totalorder 1, %s11
    %p168 = scmp.lt.s32.totalorder %s11, 3
    %p169 = pnand %p167, %p168
    %p170 = pneg %p169
    // Predicated region
    $region25: #{_forward.2} parent=5 // pred_check
      _
    $region26: #{_forward.2} parent=5 // pred_check_branch
      %172 = sbr.rel (%p169) target = $region28
    $region27: #{_forward.2} parent=5 // pred_region
      %s173 = ssub.s32 %s11, 1
      %s174 = smul.u32 4, %s16
      %p175 = scmp.lt.s32.totalorder %s174, 7
      %s176 = scalar_select %p175, %s174, 7
      %s177 = smul.addr %s176, 4
      %s178 = scalar_lea.vmem %s0, %s177
      %p179 = pneg %p37
      %p180 = pneg %p34
      %p181 = pneg %p58
      %p182 = pneg %p55
      %p183 = pneg %p84
      %p184 = pneg %p81
      %s185 = smul.u32 4, %s16
      %p186 = scmp.lt.s32.totalorder %s185, 7
      %s187 = scalar_select %p186, %s185, 7
      %s188 = smul.addr %s187, 4
      %s189 = scalar_lea.vmem %s2, %s188
      %p190 = pneg %p110
      %p191 = pneg %p107
      %p192 = scmp.lt.s32.totalorder %s16, 1
      %s193 = scalar_select %p192, %s16, 1
      %s194 = scalar_lea.vmem %s3, %s193
      %p195 = pneg %p136
      %p196 = pneg %p133
      %p197 = scmp.lt.s32.totalorder %s16, 1
      %s198 = scalar_select %p197, %s16, 1
      %s199 = scalar_lea.vmem %s4, %s198
      %s200 = smul.u32 4, %s16
      %p201 = scmp.lt.s32.totalorder %s200, 7
      %s202 = scalar_select %p201, %s200, 7
      %s203 = smul.addr %s202, 4
      %s204 = scalar_lea.vmem %s0, %s203
      %s205 = smul.u32 4, %s16
      %s206 = smul.u32 4, %s16
      %p207 = scmp.lt.s32.totalorder %s206, 7
      %s208 = scalar_select %p207, %s206, 7
      %s209 = smul.addr %s208, 4
      %s210 = scalar_lea.vmem %s2, %s209
      %s211 = smul.u32 4, %s16
      %p212 = scmp.lt.s32.totalorder %s16, 1
      %s213 = scalar_select %p212, %s16, 1
      %s214 = scalar_lea.vmem %s3, %s213
      %p215 = scmp.lt.s32.totalorder %s16, 1
      %s216 = scalar_select %p215, %s16, 1
      %s217 = scalar_lea.vmem %s4, %s216
      %v218 = vld [vmem:[%s204] sm:$0xf]
      %v219 = vld [vmem:[%s204 + $0x4] sm:$0xf]
      %v220 = vld [vmem:[%s204 + $0x8] sm:$0xf]
      %v221 = vld [vmem:[%s204 + $0xc] sm:$0xf]
      %v222 = vld [vmem:[%s1] sm:$0xf]
      %v223 = vld [vmem:[%s1 + $0x4] sm:$0xf]
      %v224 = vld [vmem:[%s1 + $0x8] sm:$0xf]
      %v225 = vld [vmem:[%s1 + $0xc] sm:$0xf]
      %v226 = vld [vmem:[%s1 + $0x10] sm:$0xf]
      %v227 = vld [vmem:[%s1 + $0x14] sm:$0xf]
      %v228 = vld [vmem:[%s1 + $0x18] sm:$0xf]
      %v229 = vld [vmem:[%s1 + $0x1c] sm:$0xf]
      %v230 = vld [vmem:[%s1 + $0x20] sm:$0xf]
      %v231 = vld [vmem:[%s1 + $0x24] sm:$0xf]
      %v232 = vld [vmem:[%s1 + $0x28] sm:$0xf]
      %v233 = vld [vmem:[%s1 + $0x2c] sm:$0xf]
      %v234 = vld [vmem:[%s1 + $0x30] sm:$0xf]
      %v235 = vld [vmem:[%s1 + $0x34] sm:$0xf]
      %v236 = vld [vmem:[%s1 + $0x38] sm:$0xf]
      %v237 = vld [vmem:[%s1 + $0x3c] sm:$0xf]
      %v242 = vunpack.c.l.b16 %v218
      %v243 = vunpack.c.l.b16 %v219
      %v244 = vunpack.c.l.b16 %v220
      %v245 = vunpack.c.l.b16 %v221
      %v246 = vpack.c.b16 %v243, %v242
      %v247 = vpack.c.b16 %v245, %v244
      %v266 = vunpack.c.l.b16 %v222
      %v267 = vunpack.c.l.b16 %v223
      %v268 = vunpack.c.l.b16 %v224
      %v269 = vunpack.c.l.b16 %v225
      %v270 = vunpack.c.l.b16 %v226
      %v271 = vunpack.c.l.b16 %v227
      %v272 = vunpack.c.l.b16 %v228
      %v273 = vunpack.c.l.b16 %v229
      %v274 = vunpack.c.l.b16 %v230
      %v275 = vunpack.c.l.b16 %v231
      %v276 = vunpack.c.l.b16 %v232
      %v277 = vunpack.c.l.b16 %v233
      %v278 = vunpack.c.l.b16 %v234
      %v279 = vunpack.c.l.b16 %v235
      %v280 = vunpack.c.l.b16 %v236
      %v281 = vunpack.c.l.b16 %v237
      %v282 = vpack.c.b16 %v267, %v266
      %v283 = vpack.c.b16 %v269, %v268
      %v284 = vpack.c.b16 %v271, %v270
      %v285 = vpack.c.b16 %v273, %v272
      %v286 = vpack.c.b16 %v275, %v274
      %v287 = vpack.c.b16 %v277, %v276
      %v288 = vpack.c.b16 %v279, %v278
      %v289 = vpack.c.b16 %v281, %v280
      %298 = vmatpush.bf16.msra.mxu0 %v289
      %299 = vmatpush.bf16.msra.mxu0 %v288
      %300 = vmatpush.bf16.msra.mxu0 %v287
      %301 = vmatpush.bf16.msra.mxu0 %v286
      %302 = vmatpush.bf16.msra.mxu0 %v285
      %303 = vmatpush.bf16.msra.mxu0 %v284
      %304 = vmatpush.bf16.msra.mxu0 %v283
      %305 = vmatpush.bf16.msra.mxu0 %v282
      %306 = vmatmul.bf16.gmra.mxu0 %v246
      %v307 = vpop.f32.mrf.mxu0
      %v308 = vadd.f32 0.0, %v307
      %v309 = vpop.f32.mrf.mxu0
      %v310 = vadd.f32 0.0, %v309
      %311 = vmatmul.bf16.gmra.mxu0 %v247
      %v312 = vpop.f32.mrf.mxu0
      %v313 = vadd.f32 0.0, %v312
      %v314 = vpop.f32.mrf.mxu0
      %v315 = vadd.f32 0.0, %v314
      %316 = vdwg.mxu0
      %v317 = vpack.c.bf16 %v308, %v308
      %v318 = vpack.c.bf16 %v310, %v310
      %v319 = vpack.c.bf16 %v313, %v313
      %v320 = vpack.c.bf16 %v315, %v315
      %321 = vst [vmem:[%s210] sm:$0xf] %v317
      %322 = vst [vmem:[%s210 + $0x4] sm:$0xf] %v318
      %323 = vst [vmem:[%s210 + $0x8] sm:$0xf] %v319
      %324 = vst [vmem:[%s210 + $0xc] sm:$0xf] %v320
      %s325 = smul.u32 %s16, 32
      %s326 = ssub.s32 64, %s325
      %p327 = scmp.lt.s32.totalorder %s326, 32
      %s328 = scalar_select %p327, %s326, 32
      %v329 = vadd.f32 %v308, %v310
      %v330 = vadd.f32 %v329, %v313
      %v331 = vadd.f32 %v330, %v315
      %v332 = vrot.slane %v331, 4
      %v333 = vadd.f32 %v331, %v332
      %v334 = vrot.slane %v333, 2
      %v335 = vadd.f32 %v333, %v334
      %v336 = vrot.slane %v335, 1
      %v337 = vadd.f32 %v335, %v336
      %s338 = scvt.s32.f32 %s328
      %v339 = vstv %s338
      %v340 = vrcp.pop %v339
      %v341 = vmul.f32 %v339, %v340
      %v342 = vsub.f32 1.0, %v341
      %v343 = vmul.f32 %v340, %v342
      %v344 = vadd.f32 %v340, %v343
      %vm345 = vweird.f32 %v339
      %vm346 = vweird.f32 %v340
      %vm347 = vmor %vm345, %vm346
      %v348 = vsel %vm347, %v340, %v344
      %v349 = vand.u32 2147483647, %v339
      %vm350 = vcmp.eq.f32.partialorder %v349, 8.507059e+37
      %v351 = vand.u32 %v339, 2147483648
      %v352 = vor.u32 1.1754944e-38, %v351
      %v353 = vsel %vm350, %v352, %v348
      %v354 = vmul.f32 %v337, %v353
      %v355 = vlaneseq
      %v356 = vshrl.u32 %v355, 7
      %v357 = vadd.s32 %v356, 8
      %v358 = vadd.s32 %v356, 16
      %v359 = vadd.s32 %v356, 24
      %v360 = vstv %s328
      %vm361 = vcmp.lt.s32.totalorder %v356, %v360
      %vm362 = vcmp.lt.s32.totalorder %v357, %v360
      %vm363 = vcmp.lt.s32.totalorder %v358, %v360
      %vm364 = vcmp.lt.s32.totalorder %v359, %v360
      %v365 = vsub.f32 %v308, %v354
      %v366 = vsub.f32 %v310, %v354
      %v367 = vsub.f32 %v313, %v354
      %v368 = vsub.f32 %v315, %v354
      %v369 = vsel %vm361, 1, 0
      %v370 = vsel %vm362, 1, 0
      %v371 = vsel %vm363, 1, 0
      %v372 = vsel %vm364, 1, 0
      %vm373 = vcmp.eq.s32.totalorder %v369, 1
      %vm374 = vcmp.eq.s32.totalorder %v370, 1
      %vm375 = vcmp.eq.s32.totalorder %v371, 1
      %vm376 = vcmp.eq.s32.totalorder %v372, 1
      %v377 = vsel %vm373, %v365, 0.0
      %v378 = vsel %vm374, %v366, 0.0
      %v379 = vsel %vm375, %v367, 0.0
      %v380 = vsel %vm376, %v368, 0.0
      %v381 = vmul.f32 %v377, %v377
      %v382 = vmul.f32 %v378, %v378
      %v383 = vmul.f32 %v379, %v379
      %v384 = vmul.f32 %v380, %v380
      %v385 = vadd.f32 %v381, %v382
      %v386 = vadd.f32 %v385, %v383
      %v387 = vadd.f32 %v386, %v384
      %v388 = vrot.slane %v387, 4
      %v389 = vadd.f32 %v387, %v388
      %v390 = vrot.slane %v389, 2
      %v391 = vadd.f32 %v389, %v390
      %v392 = vrot.slane %v391, 1
      %v393 = vadd.f32 %v391, %v392
      %394 = vst [vmem:[%s214] sm:$0x1] %v337
      %395 = vst [vmem:[%s217] sm:$0x1] %v393
      %s396 = smul.u32 4, %s16
      %p397 = scmp.lt.s32.totalorder %s396, 7
      %s398 = scalar_select %p397, %s396, 7
      %s399 = smul.addr %s398, 4
      %s400 = scalar_lea.vmem %s2, %s399
      %p401 = scmp.lt.s32.totalorder %s16, 1
      %s402 = scalar_select %p401, %s16, 1
      %s403 = scalar_lea.vmem %s3, %s402
      %p404 = scmp.lt.s32.totalorder %s16, 1
      %s405 = scalar_select %p404, %s16, 1
      %s406 = scalar_lea.vmem %s4, %s405
      // Predicated region
      $region29: #{_forward.2} parent=27 // pred_check
        %p407 = pneg %p81
      $region30: #{_forward.2} parent=27 // pred_check_branch
        %409 = sbr.rel (%p407) target = $region32
      $region31: #{_forward.2} parent=27 // pred_region
        %s410 = smul.u32 4, %s16
      $region32: #{_forward.2} parent=27 // pred_fallthru
        _
      // Predicated region
      $region33: #{_forward.2} parent=27 // pred_check
        %p411 = pneg %p107
      $region34: #{_forward.2} parent=27 // pred_check_branch
        %413 = sbr.rel (%p411) target = $region36
      $region35: #{_forward.2} parent=27 // pred_region
        _
      $region36: #{_forward.2} parent=27 // pred_fallthru
        _
      // Predicated region
      $region37: #{_forward.2} parent=27 // pred_check
        %p414 = pneg %p133
      $region38: #{_forward.2} parent=27 // pred_check_branch
        %416 = sbr.rel (%p414) target = $region40
      $region39: #{_forward.2} parent=27 // pred_region
        _
      $region40: #{_forward.2} parent=27 // pred_fallthru
        _
    $region28: #{_forward.2} parent=5 // pred_fallthru
      _
    %p417 = scmp.le.s32.totalorder 2, %s11
    // Predicated region
    $region41: #{_forward.2} parent=5 // pred_check
      %p418 = pneg %p417
    $region42: #{_forward.2} parent=5 // pred_check_branch
      %420 = sbr.rel (%p418) target = $region44
    $region43: #{_forward.2} parent=5 // pred_region
      %s421 = ssub.s32 %s11, 2
      // Predicated region
      $region45: #{_forward.2} parent=43 // pred_check
        %p422 = pneg %p87
      $region46: #{_forward.2} parent=43 // pred_check_branch
        %424 = sbr.rel (%p422) target = $region48
      $region47: #{_forward.2} parent=43 // pred_region
        %s425 = smul.u32 4, %s17
        %p426 = scmp.lt.s32.totalorder %s425, 7
        %s427 = scalar_select %p426, %s425, 7
        %s428 = smul.addr %s427, 4
        %s429 = scalar_lea.vmem %s2, %s428
      $region48: #{_forward.2} parent=43 // pred_fallthru
        _
      // Predicated region
      $region49: #{_forward.2} parent=43 // pred_check
        %p430 = pneg %p113
      $region50: #{_forward.2} parent=43 // pred_check_branch
        %432 = sbr.rel (%p430) target = $region52
      $region51: #{_forward.2} parent=43 // pred_region
        %p433 = scmp.lt.s32.totalorder %s17, 1
        %s434 = scalar_select %p433, %s17, 1
        %s435 = scalar_lea.vmem %s3, %s434
      $region52: #{_forward.2} parent=43 // pred_fallthru
        _
      // Predicated region
      $region53: #{_forward.2} parent=43 // pred_check
        %p436 = pneg %p139
      $region54: #{_forward.2} parent=43 // pred_check_branch
        %438 = sbr.rel (%p436) target = $region56
      $region55: #{_forward.2} parent=43 // pred_region
        %p439 = scmp.lt.s32.totalorder %s17, 1
        %s440 = scalar_select %p439, %s17, 1
        %s441 = scalar_lea.vmem %s4, %s440
      $region56: #{_forward.2} parent=43 // pred_fallthru
        _
    $region44: #{_forward.2} parent=5 // pred_fallthru
      _
  $region6: #{_forward.2} parent=0 // loop_footer
    %s15 = sadd.s32 1, %s11
  $region7: #{_forward.2} parent=0 // loop_footer_branch
    %10 = sbr.rel target = $region3
  $region8: #{_forward.2} parent=0 // loop_exit
    _

</llo_original>
